<compile_context>
chip_gen: v7x
topology: tpu7x:2x2x1
jax: 0.10.0
libtpu: 0.0.40
codegen_flags: <defaults>
</compile_context>

<pallas_src>
import functools

import jax
import jax.numpy as jnp
from jax import lax
from jax.experimental import pallas as pl
from jax.experimental.pallas import tpu as pltpu

ALPHA = 0.1
OUT_LANES = 128  # lane-dense scalar output row


# ------------------------------ fused kernel ------------------------------- #
def _fused_loss_dc_kernel(*refs, alpha, n_controls):
    # refs = (logit, target, latent, control_0 .. control_{K-1}, out)
    logit_ref, target_ref, latent_ref = refs[0], refs[1], refs[2]
    control_refs = refs[3:3 + n_controls]
    out_ref = refs[-1]

    # ---------------- cross entropy (mean, integer targets) ---------------- #
    x = logit_ref[...].astype(jnp.float32)              # [B, C]
    t = target_ref[...]                                  # [B, 1] int32
    b, c = x.shape
    m = jnp.max(x, axis=-1, keepdims=True)                               # [B,1]
    lse = jnp.log(jnp.sum(jnp.exp(x - m), axis=-1, keepdims=True)) + m   # [B,1]
    cls_ids = lax.broadcasted_iota(jnp.int32, (b, c), 1)                 # [B,C]
    onehot = (cls_ids == t).astype(jnp.float32)
    tgt_logit = jnp.sum(x * onehot, axis=-1, keepdims=True)              # [B,1]
    cls_loss = jnp.mean(lse - tgt_logit)                                 # scalar

    # ---------------------- distance correlation helpers ------------------- #
    def normalize(v):
        # F.normalize(v): v / max(||v||_2, 1e-12) along dim=1
        nrm = jnp.sqrt(jnp.sum(v * v, axis=-1, keepdims=True))
        return v / jnp.maximum(nrm, 1e-12)

    def dist_matrix(v):
        # ||v_i - v_j||^2 = |v_i|^2 + |v_j|^2 - 2 v_i.v_j
        # Contract dim 1 of both operands directly -> no explicit v.T.
        g = lax.dot_general(v, v,
                            dimension_numbers=(((1,), (1,)), ((), ())),
                            preferred_element_type=jnp.float32)          # [B,B]
        # Keep the general |v|^2 form: rows that were all-zero normalize to zero,
        # for which the "2 - 2g" shortcut would be wrong.
        sq = jnp.sum(v * v, axis=-1, keepdims=True)                      # [B,1]
        d2 = jnp.maximum(sq + sq.T - 2.0 * g, 0.0)
        return jnp.sqrt(d2 + 1e-12)

    def center(mm):
        return (mm
                - jnp.mean(mm, axis=0, keepdims=True)
                - jnp.mean(mm, axis=1, keepdims=True)
                + jnp.mean(mm))

    # Latent-side work: computed ONCE, reused for every control.
    xl = normalize(latent_ref[...].astype(jnp.float32))
    A = center(dist_matrix(xl))
    nn = A.shape[0] * A.shape[1]
    gamma_xx = jnp.sum(A * A) / nn

    dc_vals = []
    for c_ref in control_refs:
        y = normalize(c_ref[...].astype(jnp.float32))
        Bm = center(dist_matrix(y))
        gamma_xy = jnp.sum(A * Bm) / nn
        gamma_yy = jnp.sum(Bm * Bm) / nn
        dc_vals.append(gamma_xy / jnp.sqrt(gamma_xx * gamma_yy + 1e-9))

    dc_loss = sum(dc_vals) / (n_controls + 1e-12)   # matches reference: /(len+1e-12)
    loss = cls_loss + alpha * dc_loss

    # Lane-dense epilogue: one (1, 128) unmasked store with all scalars packed.
    lane = lax.broadcasted_iota(jnp.int32, (1, OUT_LANES), 1)
    out = jnp.zeros((1, OUT_LANES), jnp.float32)
    for idx, val in enumerate([loss, cls_loss, dc_loss] + dc_vals):
        out = jnp.where(lane == idx, val, out)
    out_ref[...] = out


# -------------------------------- wrapper ---------------------------------- #
@functools.partial(jax.jit, static_argnames=("alpha",))
def loss_dc_forward(logit, target, latent, controls, alpha=ALPHA):
    B, C = logit.shape
    D = latent.shape[1]
    K = len(controls)

    kernel = functools.partial(_fused_loss_dc_kernel, alpha=alpha, n_controls=K)

    flops = 2 * B * B * D + sum(2 * B * B * cc.shape[1] for cc in controls)
    bytes_accessed = 4 * (B * C + B + B * D
                          + sum(B * cc.shape[1] for cc in controls) + OUT_LANES)
    transcendentals = B * C + (K + 1) * (B + B * B) + K  # exp/log + sqrt counts (approx.)

    out = pl.pallas_call(
        kernel,
        out_shape=jax.ShapeDtypeStruct((1, OUT_LANES), jnp.float32),
        in_specs=[pl.BlockSpec(memory_space=pltpu.MemorySpace.VMEM)] * (3 + K),
        out_specs=pl.BlockSpec(memory_space=pltpu.MemorySpace.VMEM),
        compiler_params=pltpu.CompilerParams(vmem_limit_bytes=32 * 1024 * 1024),
        cost_estimate=pl.CostEstimate(flops=flops,
                                      transcendentals=transcendentals,
                                      bytes_accessed=bytes_accessed),
    )(
        logit.astype(jnp.float32),
        target.reshape(B, 1).astype(jnp.int32),
        latent.astype(jnp.float32),
        *[cc.astype(jnp.float32) for cc in controls],
    )

    loss = out[0, 0]
    cls_loss = out[0, 1]
    dc_loss = out[0, 2]
    dc_results = [out[0, 3 + i] for i in range(K)]
    return loss, cls_loss, dc_loss, dc_results


# --------------------------- pure-JAX reference ----------------------------- #
def _reference(logit, target, latent, controls, alpha):
    logp = logit - jax.nn.logsumexp(logit, axis=-1, keepdims=True)
    cls_loss = -jnp.mean(jnp.take_along_axis(logp, target[:, None], axis=-1))

    def dc(lat, ctl):
        def nrm(v):
            return v / jnp.maximum(jnp.linalg.norm(v, axis=-1, keepdims=True), 1e-12)
        lat, ctl = nrm(lat), nrm(ctl)
        a = jnp.sqrt(jnp.sum((lat[None] - lat[:, None]) ** 2, -1) + 1e-12)
        bm = jnp.sqrt(jnp.sum((ctl[None] - ctl[:, None]) ** 2, -1) + 1e-12)
        A = a - a.mean(0, keepdims=True) - a.mean(1, keepdims=True) + a.mean()
        Bm = bm - bm.mean(0, keepdims=True) - bm.mean(1, keepdims=True) + bm.mean()
        n = A.shape[0] * A.shape[1]
        return (jnp.sum(A * Bm) / n) / jnp.sqrt(
            (jnp.sum(A * A) / n) * (jnp.sum(Bm * Bm) / n) + 1e-9)

    dcs = [dc(latent, cc) for cc in controls]
    dc_loss = sum(dcs) / (len(controls) + 1e-12)
    return cls_loss + alpha * dc_loss, cls_loss, dc_loss, dcs


if __name__ == "__main__":
    import numpy as np

    key = jax.random.PRNGKey(0)
    k_logit, k_target, k_latent, k_c0, k_c1 = jax.random.split(key, 5)

    B, C, D = 8, 16, 32
    logit = jax.random.normal(k_logit, (B, C), dtype=jnp.float32)
    target = jax.random.randint(k_target, (B,), 0, C, dtype=jnp.int32)
    latent = jax.random.normal(k_latent, (B, D), dtype=jnp.float32)
    controls = (
        jax.random.normal(k_c0, (B, D), dtype=jnp.float32),
        jax.random.normal(k_c1, (B, 2 * D), dtype=jnp.float32),
    )

    loss, cls_loss, dc_loss, dc_results = loss_dc_forward(
        logit, target, latent, controls, alpha=ALPHA
    )
    jax.block_until_ready(loss)
    jax.block_until_ready(cls_loss)
    jax.block_until_ready(dc_loss)
    for dc in dc_results:
        jax.block_until_ready(dc)

    # Loose numerical check against a pure-JAX reference (tolerance covers MXU precision).
    ref_loss, ref_cls, ref_dc, ref_dcs = _reference(logit, target, latent, controls, ALPHA)
    np.testing.assert_allclose(np.array(loss), np.array(ref_loss), rtol=2e-2, atol=2e-2)
    np.testing.assert_allclose(np.array(cls_loss), np.array(ref_cls), rtol=2e-2, atol=2e-2)
    np.testing.assert_allclose(np.array(dc_loss), np.array(ref_dc), rtol=2e-2, atol=2e-2)
    for got, want in zip(dc_results, ref_dcs):
        np.testing.assert_allclose(np.array(got), np.array(want), rtol=2e-2, atol=2e-2)

    print("KERNEL_OK")
</pallas_src>

<mosaic_0001>
module attributes {stable_mosaic.version = 11 : i64} {
  func.func @_fused_loss_dc_kernel(%arg0: memref<8x16xf32, #tpu.memory_space<vmem>>, %arg1: memref<8x1xi32, #tpu.memory_space<vmem>>, %arg2: memref<8x32xf32, #tpu.memory_space<vmem>>, %arg3: memref<8x32xf32, #tpu.memory_space<vmem>>, %arg4: memref<8x64xf32, #tpu.memory_space<vmem>>, %arg5: memref<1x128xf32, #tpu.memory_space<vmem>>) attributes {dimension_semantics = [], scalar_prefetch = 0 : i64, scratch_operands = 0 : i64, tpu.core_type = #tpu.core_type<tc>} {
    %c0 = arith.constant 0 : index
    %c0_0 = arith.constant 0 : index
    %0 = vector.load %arg0[%c0, %c0_0] : memref<8x16xf32, #tpu.memory_space<vmem>>, vector<8x16xf32>
    %c0_1 = arith.constant 0 : index
    %c0_2 = arith.constant 0 : index
    %1 = vector.load %arg1[%c0_1, %c0_2] : memref<8x1xi32, #tpu.memory_space<vmem>>, vector<8x1xi32>
    %cst = arith.constant dense<0xFF800000> : vector<8xf32>
    %2 = vector.multi_reduction <maximumf>, %0, %cst [1] : vector<8x16xf32> to vector<8xf32>
    %3 = vector.shape_cast %2 : vector<8xf32> to vector<8x1xf32>
    %4 = vector.broadcast %3 : vector<8x1xf32> to vector<8x16xf32>
    %5 = arith.subf %0, %4 : vector<8x16xf32>
    %6 = math.exp %5 : vector<8x16xf32>
    %cst_3 = arith.constant dense<0.000000e+00> : vector<8xf32>
    %7 = vector.multi_reduction <add>, %6, %cst_3 [1] : vector<8x16xf32> to vector<8xf32>
    %8 = vector.shape_cast %7 : vector<8xf32> to vector<8x1xf32>
    %9 = math.log %8 : vector<8x1xf32>
    %10 = arith.addf %9, %3 : vector<8x1xf32>
    %11 = tpu.iota {dimensions = array<i32: 1>} : vector<8x16xi32>
    %12 = vector.broadcast %1 : vector<8x1xi32> to vector<8x16xi32>
    %13 = arith.cmpi eq, %11, %12 : vector<8x16xi32>
    %14 = arith.extui %13 : vector<8x16xi1> to vector<8x16xi32>
    %15 = arith.sitofp %14 : vector<8x16xi32> to vector<8x16xf32>
    %16 = arith.mulf %0, %15 : vector<8x16xf32>
    %cst_4 = arith.constant dense<0.000000e+00> : vector<8xf32>
    %17 = vector.multi_reduction <add>, %16, %cst_4 [1] : vector<8x16xf32> to vector<8xf32>
    %18 = vector.shape_cast %17 : vector<8xf32> to vector<8x1xf32>
    %19 = arith.subf %10, %18 : vector<8x1xf32>
    %20 = vector.shape_cast %19 : vector<8x1xf32> to vector<1x8x1xf32>
    %cst_5 = arith.constant dense<0.000000e+00> : vector<1xf32>
    %21 = vector.multi_reduction <add>, %20, %cst_5 [1, 2] : vector<1x8x1xf32> to vector<1xf32>
    %22 = vector.shape_cast %21 : vector<1xf32> to vector<1x1x1xf32>
    %23 = vector.extract %22[0, 0, 0] : f32 from vector<1x1x1xf32>
    %cst_6 = arith.constant 8.000000e+00 : f32
    %24 = arith.divf %23, %cst_6 : f32
    %c0_7 = arith.constant 0 : index
    %c0_8 = arith.constant 0 : index
    %25 = vector.load %arg2[%c0_7, %c0_8] : memref<8x32xf32, #tpu.memory_space<vmem>>, vector<8x32xf32>
    %26 = arith.mulf %25, %25 : vector<8x32xf32>
    %cst_9 = arith.constant dense<0.000000e+00> : vector<8xf32>
    %27 = vector.multi_reduction <add>, %26, %cst_9 [1] : vector<8x32xf32> to vector<8xf32>
    %28 = vector.shape_cast %27 : vector<8xf32> to vector<8x1xf32>
    %29 = math.sqrt %28 : vector<8x1xf32>
    %cst_10 = arith.constant 9.99999996E-13 : f32
    %30 = vector.broadcast %cst_10 : f32 to vector<8x1xf32>
    %31 = arith.maximumf %29, %30 : vector<8x1xf32>
    %32 = vector.broadcast %31 : vector<8x1xf32> to vector<8x32xf32>
    %33 = arith.divf %25, %32 : vector<8x32xf32>
    %cst_11 = arith.constant dense<0.000000e+00> : vector<8x8xf32>
    %34 = tpu.matmul %33, %33, %cst_11 {dimension_numbers = #tpu.dot_dimension_numbers<[1], [1], [0], [0], [0, 0, 1, 0], [], []>} : vector<8x32xf32>, vector<8x32xf32>, vector<8x8xf32> -> vector<8x8xf32>
    %35 = arith.mulf %33, %33 : vector<8x32xf32>
    %cst_12 = arith.constant dense<0.000000e+00> : vector<8xf32>
    %36 = vector.multi_reduction <add>, %35, %cst_12 [1] : vector<8x32xf32> to vector<8xf32>
    %37 = vector.shape_cast %36 : vector<8xf32> to vector<8x1xf32>
    %38 = tpu.transpose %37, [1, 0] : vector<8x1xf32> -> vector<1x8xf32>
    %39 = vector.broadcast %37 : vector<8x1xf32> to vector<8x8xf32>
    %40 = vector.broadcast %38 : vector<1x8xf32> to vector<8x8xf32>
    %41 = arith.addf %39, %40 : vector<8x8xf32>
    %cst_13 = arith.constant 2.000000e+00 : f32
    %42 = vector.broadcast %cst_13 : f32 to vector<8x8xf32>
    %43 = arith.mulf %42, %34 : vector<8x8xf32>
    %44 = arith.subf %41, %43 : vector<8x8xf32>
    %cst_14 = arith.constant 0.000000e+00 : f32
    %45 = vector.broadcast %cst_14 : f32 to vector<8x8xf32>
    %46 = arith.maximumf %44, %45 : vector<8x8xf32>
    %cst_15 = arith.constant 9.99999996E-13 : f32
    %47 = vector.broadcast %cst_15 : f32 to vector<8x8xf32>
    %48 = arith.addf %46, %47 : vector<8x8xf32>
    %49 = math.sqrt %48 : vector<8x8xf32>
    %cst_16 = arith.constant dense<0.000000e+00> : vector<8xf32>
    %50 = vector.multi_reduction <add>, %49, %cst_16 [0] : vector<8x8xf32> to vector<8xf32>
    %51 = vector.shape_cast %50 : vector<8xf32> to vector<1x8xf32>
    %cst_17 = arith.constant 8.000000e+00 : f32
    %52 = vector.broadcast %cst_17 : f32 to vector<1x8xf32>
    %53 = arith.divf %51, %52 : vector<1x8xf32>
    %54 = vector.broadcast %53 : vector<1x8xf32> to vector<8x8xf32>
    %55 = arith.subf %49, %54 : vector<8x8xf32>
    %cst_18 = arith.constant dense<0.000000e+00> : vector<8xf32>
    %56 = vector.multi_reduction <add>, %49, %cst_18 [1] : vector<8x8xf32> to vector<8xf32>
    %57 = vector.shape_cast %56 : vector<8xf32> to vector<8x1xf32>
    %cst_19 = arith.constant 8.000000e+00 : f32
    %58 = vector.broadcast %cst_19 : f32 to vector<8x1xf32>
    %59 = arith.divf %57, %58 : vector<8x1xf32>
    %60 = vector.broadcast %59 : vector<8x1xf32> to vector<8x8xf32>
    %61 = arith.subf %55, %60 : vector<8x8xf32>
    %62 = vector.shape_cast %49 : vector<8x8xf32> to vector<1x8x8xf32>
    %cst_20 = arith.constant dense<0.000000e+00> : vector<1xf32>
    %63 = vector.multi_reduction <add>, %62, %cst_20 [1, 2] : vector<1x8x8xf32> to vector<1xf32>
    %64 = vector.shape_cast %63 : vector<1xf32> to vector<1x1x1xf32>
    %65 = vector.extract %64[0, 0, 0] : f32 from vector<1x1x1xf32>
    %cst_21 = arith.constant 6.400000e+01 : f32
    %66 = arith.divf %65, %cst_21 : f32
    %67 = vector.broadcast %66 : f32 to vector<8x8xf32>
    %68 = arith.addf %61, %67 : vector<8x8xf32>
    %69 = arith.mulf %68, %68 : vector<8x8xf32>
    %70 = vector.shape_cast %69 : vector<8x8xf32> to vector<1x8x8xf32>
    %cst_22 = arith.constant dense<0.000000e+00> : vector<1xf32>
    %71 = vector.multi_reduction <add>, %70, %cst_22 [1, 2] : vector<1x8x8xf32> to vector<1xf32>
    %72 = vector.shape_cast %71 : vector<1xf32> to vector<1x1x1xf32>
    %73 = vector.extract %72[0, 0, 0] : f32 from vector<1x1x1xf32>
    %cst_23 = arith.constant 6.400000e+01 : f32
    %74 = arith.divf %73, %cst_23 : f32
    %c0_24 = arith.constant 0 : index
    %c0_25 = arith.constant 0 : index
    %75 = vector.load %arg3[%c0_24, %c0_25] : memref<8x32xf32, #tpu.memory_space<vmem>>, vector<8x32xf32>
    %76 = arith.mulf %75, %75 : vector<8x32xf32>
    %cst_26 = arith.constant dense<0.000000e+00> : vector<8xf32>
    %77 = vector.multi_reduction <add>, %76, %cst_26 [1] : vector<8x32xf32> to vector<8xf32>
    %78 = vector.shape_cast %77 : vector<8xf32> to vector<8x1xf32>
    %79 = math.sqrt %78 : vector<8x1xf32>
    %cst_27 = arith.constant 9.99999996E-13 : f32
    %80 = vector.broadcast %cst_27 : f32 to vector<8x1xf32>
    %81 = arith.maximumf %79, %80 : vector<8x1xf32>
    %82 = vector.broadcast %81 : vector<8x1xf32> to vector<8x32xf32>
    %83 = arith.divf %75, %82 : vector<8x32xf32>
    %cst_28 = arith.constant dense<0.000000e+00> : vector<8x8xf32>
    %84 = tpu.matmul %83, %83, %cst_28 {dimension_numbers = #tpu.dot_dimension_numbers<[1], [1], [0], [0], [0, 0, 1, 0], [], []>} : vector<8x32xf32>, vector<8x32xf32>, vector<8x8xf32> -> vector<8x8xf32>
    %85 = arith.mulf %83, %83 : vector<8x32xf32>
    %cst_29 = arith.constant dense<0.000000e+00> : vector<8xf32>
    %86 = vector.multi_reduction <add>, %85, %cst_29 [1] : vector<8x32xf32> to vector<8xf32>
    %87 = vector.shape_cast %86 : vector<8xf32> to vector<8x1xf32>
    %88 = tpu.transpose %87, [1, 0] : vector<8x1xf32> -> vector<1x8xf32>
    %89 = vector.broadcast %87 : vector<8x1xf32> to vector<8x8xf32>
    %90 = vector.broadcast %88 : vector<1x8xf32> to vector<8x8xf32>
    %91 = arith.addf %89, %90 : vector<8x8xf32>
    %cst_30 = arith.constant 2.000000e+00 : f32
    %92 = vector.broadcast %cst_30 : f32 to vector<8x8xf32>
    %93 = arith.mulf %92, %84 : vector<8x8xf32>
    %94 = arith.subf %91, %93 : vector<8x8xf32>
    %cst_31 = arith.constant 0.000000e+00 : f32
    %95 = vector.broadcast %cst_31 : f32 to vector<8x8xf32>
    %96 = arith.maximumf %94, %95 : vector<8x8xf32>
    %cst_32 = arith.constant 9.99999996E-13 : f32
    %97 = vector.broadcast %cst_32 : f32 to vector<8x8xf32>
    %98 = arith.addf %96, %97 : vector<8x8xf32>
    %99 = math.sqrt %98 : vector<8x8xf32>
    %cst_33 = arith.constant dense<0.000000e+00> : vector<8xf32>
    %100 = vector.multi_reduction <add>, %99, %cst_33 [0] : vector<8x8xf32> to vector<8xf32>
    %101 = vector.shape_cast %100 : vector<8xf32> to vector<1x8xf32>
    %cst_34 = arith.constant 8.000000e+00 : f32
    %102 = vector.broadcast %cst_34 : f32 to vector<1x8xf32>
    %103 = arith.divf %101, %102 : vector<1x8xf32>
    %104 = vector.broadcast %103 : vector<1x8xf32> to vector<8x8xf32>
    %105 = arith.subf %99, %104 : vector<8x8xf32>
    %cst_35 = arith.constant dense<0.000000e+00> : vector<8xf32>
    %106 = vector.multi_reduction <add>, %99, %cst_35 [1] : vector<8x8xf32> to vector<8xf32>
    %107 = vector.shape_cast %106 : vector<8xf32> to vector<8x1xf32>
    %cst_36 = arith.constant 8.000000e+00 : f32
    %108 = vector.broadcast %cst_36 : f32 to vector<8x1xf32>
    %109 = arith.divf %107, %108 : vector<8x1xf32>
    %110 = vector.broadcast %109 : vector<8x1xf32> to vector<8x8xf32>
    %111 = arith.subf %105, %110 : vector<8x8xf32>
    %112 = vector.shape_cast %99 : vector<8x8xf32> to vector<1x8x8xf32>
    %cst_37 = arith.constant dense<0.000000e+00> : vector<1xf32>
    %113 = vector.multi_reduction <add>, %112, %cst_37 [1, 2] : vector<1x8x8xf32> to vector<1xf32>
    %114 = vector.shape_cast %113 : vector<1xf32> to vector<1x1x1xf32>
    %115 = vector.extract %114[0, 0, 0] : f32 from vector<1x1x1xf32>
    %cst_38 = arith.constant 6.400000e+01 : f32
    %116 = arith.divf %115, %cst_38 : f32
    %117 = vector.broadcast %116 : f32 to vector<8x8xf32>
    %118 = arith.addf %111, %117 : vector<8x8xf32>
    %119 = arith.mulf %68, %118 : vector<8x8xf32>
    %120 = vector.shape_cast %119 : vector<8x8xf32> to vector<1x8x8xf32>
    %cst_39 = arith.constant dense<0.000000e+00> : vector<1xf32>
    %121 = vector.multi_reduction <add>, %120, %cst_39 [1, 2] : vector<1x8x8xf32> to vector<1xf32>
    %122 = vector.shape_cast %121 : vector<1xf32> to vector<1x1x1xf32>
    %123 = vector.extract %122[0, 0, 0] : f32 from vector<1x1x1xf32>
    %cst_40 = arith.constant 6.400000e+01 : f32
    %124 = arith.divf %123, %cst_40 : f32
    %125 = arith.mulf %118, %118 : vector<8x8xf32>
    %126 = vector.shape_cast %125 : vector<8x8xf32> to vector<1x8x8xf32>
    %cst_41 = arith.constant dense<0.000000e+00> : vector<1xf32>
    %127 = vector.multi_reduction <add>, %126, %cst_41 [1, 2] : vector<1x8x8xf32> to vector<1xf32>
    %128 = vector.shape_cast %127 : vector<1xf32> to vector<1x1x1xf32>
    %129 = vector.extract %128[0, 0, 0] : f32 from vector<1x1x1xf32>
    %cst_42 = arith.constant 6.400000e+01 : f32
    %130 = arith.divf %129, %cst_42 : f32
    %131 = arith.mulf %74, %130 : f32
    %cst_43 = arith.constant 9.99999971E-10 : f32
    %132 = arith.addf %131, %cst_43 : f32
    %133 = math.sqrt %132 : f32
    %134 = arith.divf %124, %133 : f32
    %c0_44 = arith.constant 0 : index
    %c0_45 = arith.constant 0 : index
    %135 = vector.load %arg4[%c0_44, %c0_45] : memref<8x64xf32, #tpu.memory_space<vmem>>, vector<8x64xf32>
    %136 = arith.mulf %135, %135 : vector<8x64xf32>
    %cst_46 = arith.constant dense<0.000000e+00> : vector<8xf32>
    %137 = vector.multi_reduction <add>, %136, %cst_46 [1] : vector<8x64xf32> to vector<8xf32>
    %138 = vector.shape_cast %137 : vector<8xf32> to vector<8x1xf32>
    %139 = math.sqrt %138 : vector<8x1xf32>
    %cst_47 = arith.constant 9.99999996E-13 : f32
    %140 = vector.broadcast %cst_47 : f32 to vector<8x1xf32>
    %141 = arith.maximumf %139, %140 : vector<8x1xf32>
    %142 = vector.broadcast %141 : vector<8x1xf32> to vector<8x64xf32>
    %143 = arith.divf %135, %142 : vector<8x64xf32>
    %cst_48 = arith.constant dense<0.000000e+00> : vector<8x8xf32>
    %144 = tpu.matmul %143, %143, %cst_48 {dimension_numbers = #tpu.dot_dimension_numbers<[1], [1], [0], [0], [0, 0, 1, 0], [], []>} : vector<8x64xf32>, vector<8x64xf32>, vector<8x8xf32> -> vector<8x8xf32>
    %145 = arith.mulf %143, %143 : vector<8x64xf32>
    %cst_49 = arith.constant dense<0.000000e+00> : vector<8xf32>
    %146 = vector.multi_reduction <add>, %145, %cst_49 [1] : vector<8x64xf32> to vector<8xf32>
    %147 = vector.shape_cast %146 : vector<8xf32> to vector<8x1xf32>
    %148 = tpu.transpose %147, [1, 0] : vector<8x1xf32> -> vector<1x8xf32>
    %149 = vector.broadcast %147 : vector<8x1xf32> to vector<8x8xf32>
    %150 = vector.broadcast %148 : vector<1x8xf32> to vector<8x8xf32>
    %151 = arith.addf %149, %150 : vector<8x8xf32>
    %cst_50 = arith.constant 2.000000e+00 : f32
    %152 = vector.broadcast %cst_50 : f32 to vector<8x8xf32>
    %153 = arith.mulf %152, %144 : vector<8x8xf32>
    %154 = arith.subf %151, %153 : vector<8x8xf32>
    %cst_51 = arith.constant 0.000000e+00 : f32
    %155 = vector.broadcast %cst_51 : f32 to vector<8x8xf32>
    %156 = arith.maximumf %154, %155 : vector<8x8xf32>
    %cst_52 = arith.constant 9.99999996E-13 : f32
    %157 = vector.broadcast %cst_52 : f32 to vector<8x8xf32>
    %158 = arith.addf %156, %157 : vector<8x8xf32>
    %159 = math.sqrt %158 : vector<8x8xf32>
    %cst_53 = arith.constant dense<0.000000e+00> : vector<8xf32>
    %160 = vector.multi_reduction <add>, %159, %cst_53 [0] : vector<8x8xf32> to vector<8xf32>
    %161 = vector.shape_cast %160 : vector<8xf32> to vector<1x8xf32>
    %cst_54 = arith.constant 8.000000e+00 : f32
    %162 = vector.broadcast %cst_54 : f32 to vector<1x8xf32>
    %163 = arith.divf %161, %162 : vector<1x8xf32>
    %164 = vector.broadcast %163 : vector<1x8xf32> to vector<8x8xf32>
    %165 = arith.subf %159, %164 : vector<8x8xf32>
    %cst_55 = arith.constant dense<0.000000e+00> : vector<8xf32>
    %166 = vector.multi_reduction <add>, %159, %cst_55 [1] : vector<8x8xf32> to vector<8xf32>
    %167 = vector.shape_cast %166 : vector<8xf32> to vector<8x1xf32>
    %cst_56 = arith.constant 8.000000e+00 : f32
    %168 = vector.broadcast %cst_56 : f32 to vector<8x1xf32>
    %169 = arith.divf %167, %168 : vector<8x1xf32>
    %170 = vector.broadcast %169 : vector<8x1xf32> to vector<8x8xf32>
    %171 = arith.subf %165, %170 : vector<8x8xf32>
    %172 = vector.shape_cast %159 : vector<8x8xf32> to vector<1x8x8xf32>
    %cst_57 = arith.constant dense<0.000000e+00> : vector<1xf32>
    %173 = vector.multi_reduction <add>, %172, %cst_57 [1, 2] : vector<1x8x8xf32> to vector<1xf32>
    %174 = vector.shape_cast %173 : vector<1xf32> to vector<1x1x1xf32>
    %175 = vector.extract %174[0, 0, 0] : f32 from vector<1x1x1xf32>
    %cst_58 = arith.constant 6.400000e+01 : f32
    %176 = arith.divf %175, %cst_58 : f32
    %177 = vector.broadcast %176 : f32 to vector<8x8xf32>
    %178 = arith.addf %171, %177 : vector<8x8xf32>
    %179 = arith.mulf %68, %178 : vector<8x8xf32>
    %180 = vector.shape_cast %179 : vector<8x8xf32> to vector<1x8x8xf32>
    %cst_59 = arith.constant dense<0.000000e+00> : vector<1xf32>
    %181 = vector.multi_reduction <add>, %180, %cst_59 [1, 2] : vector<1x8x8xf32> to vector<1xf32>
    %182 = vector.shape_cast %181 : vector<1xf32> to vector<1x1x1xf32>
    %183 = vector.extract %182[0, 0, 0] : f32 from vector<1x1x1xf32>
    %cst_60 = arith.constant 6.400000e+01 : f32
    %184 = arith.divf %183, %cst_60 : f32
    %185 = arith.mulf %178, %178 : vector<8x8xf32>
    %186 = vector.shape_cast %185 : vector<8x8xf32> to vector<1x8x8xf32>
    %cst_61 = arith.constant dense<0.000000e+00> : vector<1xf32>
    %187 = vector.multi_reduction <add>, %186, %cst_61 [1, 2] : vector<1x8x8xf32> to vector<1xf32>
    %188 = vector.shape_cast %187 : vector<1xf32> to vector<1x1x1xf32>
    %189 = vector.extract %188[0, 0, 0] : f32 from vector<1x1x1xf32>
    %cst_62 = arith.constant 6.400000e+01 : f32
    %190 = arith.divf %189, %cst_62 : f32
    %191 = arith.mulf %74, %190 : f32
    %cst_63 = arith.constant 9.99999971E-10 : f32
    %192 = arith.addf %191, %cst_63 : f32
    %193 = math.sqrt %192 : f32
    %194 = arith.divf %184, %193 : f32
    %cst_64 = arith.constant 0.000000e+00 : f32
    %195 = arith.addf %cst_64, %134 : f32
    %196 = arith.addf %195, %194 : f32
    %cst_65 = arith.constant 2.000000e+00 : f32
    %197 = arith.divf %196, %cst_65 : f32
    %cst_66 = arith.constant 1.000000e-01 : f32
    %198 = arith.mulf %cst_66, %197 : f32
    %199 = arith.addf %24, %198 : f32
    %200 = tpu.iota {dimensions = array<i32: 1>} : vector<1x128xi32>
    %cst_67 = arith.constant 0.000000e+00 : f32
    %201 = vector.broadcast %cst_67 : f32 to vector<1x128xf32>
    %c0_i32 = arith.constant 0 : i32
    %202 = vector.broadcast %c0_i32 : i32 to vector<1x128xi32>
    %203 = arith.cmpi eq, %200, %202 : vector<1x128xi32>
    %204 = vector.broadcast %199 : f32 to vector<1x128xf32>
    %205 = arith.select %203, %204, %201 : vector<1x128xi1>, vector<1x128xf32>
    %c1_i32 = arith.constant 1 : i32
    %206 = vector.broadcast %c1_i32 : i32 to vector<1x128xi32>
    %207 = arith.cmpi eq, %200, %206 : vector<1x128xi32>
    %208 = vector.broadcast %24 : f32 to vector<1x128xf32>
    %209 = arith.select %207, %208, %205 : vector<1x128xi1>, vector<1x128xf32>
    %c2_i32 = arith.constant 2 : i32
    %210 = vector.broadcast %c2_i32 : i32 to vector<1x128xi32>
    %211 = arith.cmpi eq, %200, %210 : vector<1x128xi32>
    %212 = vector.broadcast %197 : f32 to vector<1x128xf32>
    %213 = arith.select %211, %212, %209 : vector<1x128xi1>, vector<1x128xf32>
    %c3_i32 = arith.constant 3 : i32
    %214 = vector.broadcast %c3_i32 : i32 to vector<1x128xi32>
    %215 = arith.cmpi eq, %200, %214 : vector<1x128xi32>
    %216 = vector.broadcast %134 : f32 to vector<1x128xf32>
    %217 = arith.select %215, %216, %213 : vector<1x128xi1>, vector<1x128xf32>
    %c4_i32 = arith.constant 4 : i32
    %218 = vector.broadcast %c4_i32 : i32 to vector<1x128xi32>
    %219 = arith.cmpi eq, %200, %218 : vector<1x128xi32>
    %220 = vector.broadcast %194 : f32 to vector<1x128xf32>
    %221 = arith.select %219, %220, %217 : vector<1x128xi1>, vector<1x128xf32>
    %c0_68 = arith.constant 0 : index
    %c0_69 = arith.constant 0 : index
    %222 = vector.load %arg5[%c0_68, %c0_69] : memref<1x128xf32, #tpu.memory_space<vmem>>, vector<1x128xf32>
    tpu.vector_store %arg5[%c0_68, %c0_69], %221 {strides = array<i32>} : memref<1x128xf32, #tpu.memory_space<vmem>>, vector<1x128xf32>,
    return
  }
}

</mosaic_0001>

<llo_original>
// kernel: loss_dc_forward.1
$region0: #{loss_dc_forward.1}
  #allocation0 [shape = 'u32[]', space=smem, size = 0x4, offset = 0x4, fixed_abs, tag = 'smem constant byte address 0x4 - core index']
  #allocation1 [shape = 'u32[144,128]{1,0:T(1,128)}', space=vmem, size = 0x12000, scoped, tag = 'internal scratch']
  %s0 = inlined_call_operand.vmem [shape: f32[8,16], index: 0, kind: input, shape index: {}]
  %s1 = inlined_call_operand.vmem [shape: s32[8,1], index: 1, kind: input, shape index: {}]
  %s2 = inlined_call_operand.vmem [shape: f32[8,32], index: 2, kind: input, shape index: {}]
  %s3 = inlined_call_operand.vmem [shape: f32[8,32], index: 3, kind: input, shape index: {}]
  %s4 = inlined_call_operand.hbm [shape: f32[8,64], index: 4, kind: input, shape index: {}]
  %s5 = inlined_call_operand.vmem [shape: f32[1,128], index: 5, kind: output, shape index: {}]
  %s6 = sld [smem:[#allocation0]]
  $region34: #{loss_dc_forward.1} parent=0
    _
  %s8 = ssub.s32 1, %s6
  %s9 = scalar_select 0, %s8, %s6
  $region1: #{loss_dc_forward.1} parent=0
    #allocation2 [shape = 'u8[4096]{0}', space=vmem, size = 0x1000, scoped, tag = 'input window, operand 4, single buffered']
    #allocation3 [shape = 's32[1]{0}', space=sflag, size = 0x4, scoped, tag = 'scoped memory for loss_dc_forward.1']
    %10 = vsyncpa [#allocation3], 0
    // Predicated region
    $region2: #{loss_dc_forward.1} parent=1 // pred_check
      _
    $region3: #{loss_dc_forward.1} parent=1 // pred_check_branch
      %12 = sbr.rel (0) target = $region5
    $region4: #{loss_dc_forward.1} parent=1 // pred_region
      _
    $region5: #{loss_dc_forward.1} parent=1 // pred_fallthru
      _
    // Predicated region
    $region6: #{loss_dc_forward.1} parent=1 // pred_check
      _
    $region7: #{loss_dc_forward.1} parent=1 // pred_check_branch
      %14 = sbr.rel (0) target = $region9
    $region8: #{loss_dc_forward.1} parent=1 // pred_region
      _
    $region9: #{loss_dc_forward.1} parent=1 // pred_fallthru
      _
    // Predicated region
    $region10: #{loss_dc_forward.1} parent=1 // pred_check
      _
    $region11: #{loss_dc_forward.1} parent=1 // pred_check_branch
      %16 = sbr.rel (0) target = $region13
    $region12: #{loss_dc_forward.1} parent=1 // pred_region
      _
    $region13: #{loss_dc_forward.1} parent=1 // pred_fallthru
      _
    // Predicated region
    $region14: #{loss_dc_forward.1} parent=1 // pred_check
      _
    $region15: #{loss_dc_forward.1} parent=1 // pred_check_branch
      %18 = sbr.rel (0) target = $region17
    $region16: #{loss_dc_forward.1} parent=1 // pred_region
      _
    $region17: #{loss_dc_forward.1} parent=1 // pred_fallthru
      _
    // Predicated region
    $region18: #{loss_dc_forward.1} parent=1 // pred_check
      _
    $region19: #{loss_dc_forward.1} parent=1 // pred_check_branch
      %20 = sbr.rel (0) target = $region21
    $region20: #{loss_dc_forward.1} parent=1 // pred_region
      %s22 = ssub.s32 128, 128
      %23 = vsyncadd [#allocation3], %s22
      %s25 = sshll.u32 [#allocation2], 4
      %s26 = int_to_ptr.vmem [resolvable:$true] %s25
      %28 = dma.hbm_to_vmem [thread:$0]  %s4, 128, %s26, [#allocation3]
    $region21: #{loss_dc_forward.1} parent=1 // pred_fallthru
      _
    // Predicated region
    $region22: #{loss_dc_forward.1} parent=1 // pred_check
      _
    $region23: #{loss_dc_forward.1} parent=1 // pred_check_branch
      %30 = sbr.rel (0) target = $region25
    $region24: #{loss_dc_forward.1} parent=1 // pred_region
      %31 = dma.done [#allocation3], 128
    $region25: #{loss_dc_forward.1} parent=1 // pred_fallthru
      _
    %v32 = vld [vmem:[%s0] sm:$0xff]
    %v33 = vld [vmem:[%s1] sm:$0xff]
    %vm34 = vcmask 130048
    %v35 = vsel %vm34, %v32, -inf
    %36 = vmax.xlane.f32.xlu0 %v35
    %v37 = vpop.xlane.xlu0 %36
    %v38 = vsub.f32 %v32, %v37
    %v39 = vmul.f32 %v38, 1.442695
    %v40 = vpow.pop %v39
    %v41 = vsel %vm34, %v40, 0.0
    %42 = vadd.xlane.f32.xlu0 %v41
    %v43 = vpop.xlane.xlu0 %42
    %v44 = vlog2.pop %v43
    %v45 = vmul.f32 %v44, 0.6931472
    %v46 = vadd.f32 %v45, %v37
    %v47 = vlaneseq
    %v48 = vand.u32 %v47, 127
    %49 = vset.pattern.permute.xlu0 0
    %50 = vperm.xlu0 %49, %v33
    %v51 = vpop.permute.xlu0 %50
    %vm52 = vcmp.eq.s32.totalorder %v48, %v51
    %v53 = vsel %vm52, 1, 0
    %v54 = vcvt.s32.f32 %v53
    %v55 = vmul.f32 %v32, %v54
    %v56 = vsel %vm34, %v55, 0.0
    %57 = vadd.xlane.f32.xlu0 %v56
    %v58 = vpop.xlane.xlu0 %57
    %v59 = vsub.f32 %v46, %v58
    %vm60 = vcmask 7168
    %v61 = vsel %vm60, %v59, 0.0
    %62 = vadd.xlane.f32.xlu0 %v61
    %v63 = vpop.xlane.xlu0 %62
    %v64 = vrot.slane %v63, 4
    %v65 = vadd.f32 %v63, %v64
    %v66 = vrot.slane %v65, 2
    %v67 = vadd.f32 %v65, %v66
    %v68 = vrot.slane %v67, 1
    %v69 = vadd.f32 %v67, %v68
    %s70 = vtos %v69
    %v71 = vrcp.pop 8.0
    %s72 = vtos %v71
    %s73 = smul.f32 %s70, %s72
    %v74 = vld [vmem:[%s2] sm:$0xff]
    %v75 = vmul.f32 %v74, %v74
    %vm76 = vcmask 261120
    %v77 = vsel %vm76, %v75, 0.0
    %78 = vadd.xlane.f32.xlu0 %v77
    %v79 = vpop.xlane.xlu0 %78
    %v80 = vrsqrt.pop %v79
    %v81 = vmul.f32 %v79, %v80
    %vm82 = vcmp.eq.f32.partialorder %v79, inf
    %v83 = vsel %vm82, %v79, %v81
    %vm84 = vcmp.eq.f32.partialorder %v79, 0.0
    %v85 = vand.u32 %v79, 2147483648
    %v86 = vsel %vm84, %v85, %v83
    %v87 = vmax.f32 %v86, 1e-12
    %v88 = vrcp.pop %v87
    %v89 = vmul.f32 %v74, %v88
    %v91 = vsel %vm76, %v89, 0
    %93 = vmatprep.subr.mxu0 0.0
    %94 = vmatpush1.xpose.msra.mxu0 %v91
    %95 = vmatprep.subr.mxu0 0.0
    %96 = vmatpush1.xpose.msra.mxu0 0.0
    %97 = vmatprep.subr.mxu0 0.0
    %98 = vmatpush1.xpose.msra.mxu0 0.0
    %99 = vmatprep.subr.mxu0 0.0
    %100 = vmatpush1.xpose.msra.mxu0 0.0
    %101 = vmatprep.subr.mxu0 0.0
    %102 = vmatpush1.xpose.msra.mxu0 0.0
    %103 = vmatprep.subr.mxu0 0.0
    %104 = vmatpush1.xpose.msra.mxu0 0.0
    %105 = vmatprep.subr.mxu0 0.0
    %106 = vmatpush1.xpose.msra.mxu0 0.0
    %107 = vmatprep.subr.mxu0 0.0
    %108 = vmatpush1.xpose.msra.mxu0 0.0
    %109 = vmatprep.subr.mxu0 0.0
    %110 = vmatpush1.xpose.msra.mxu0 0.0
    %111 = vmatprep.subr.mxu0 0.0
    %112 = vmatpush1.xpose.msra.mxu0 0.0
    %113 = vmatprep.subr.mxu0 0.0
    %114 = vmatpush1.xpose.msra.mxu0 0.0
    %115 = vmatprep.subr.mxu0 0.0
    %116 = vmatpush1.xpose.msra.mxu0 0.0
    %117 = vmatprep.subr.mxu0 0.0
    %118 = vmatpush1.xpose.msra.mxu0 0.0
    %119 = vmatprep.subr.mxu0 0.0
    %120 = vmatpush1.xpose.msra.mxu0 0.0
    %121 = vmatprep.subr.mxu0 0.0
    %122 = vmatpush1.xpose.msra.mxu0 0.0
    %123 = vmatprep.subr.mxu0 0.0
    %124 = vmatpush1.xpose.msra.mxu0 0.0
    %125 = vmatprep.subr.mxu0 0.0
    %126 = vmatpush1.xpose.msra.mxu0 0.0
    %127 = vmatprep.subr.mxu0 0.0
    %128 = vmatpush1.xpose.msra.mxu0 0.0
    %129 = vmatprep.subr.mxu0 0.0
    %130 = vmatpush1.xpose.msra.mxu0 0.0
    %131 = vmatprep.subr.mxu0 0.0
    %132 = vmatpush1.xpose.msra.mxu0 0.0
    %133 = vmatprep.subr.mxu0 0.0
    %134 = vmatpush1.xpose.msra.mxu0 0.0
    %135 = vmatprep.subr.mxu0 0.0
    %136 = vmatpush1.xpose.msra.mxu0 0.0
    %137 = vmatprep.subr.mxu0 0.0
    %138 = vmatpush1.xpose.msra.mxu0 0.0
    %139 = vmatprep.subr.mxu0 0.0
    %140 = vmatpush1.xpose.msra.mxu0 0.0
    %141 = vmatprep.subr.mxu0 0.0
    %142 = vmatpush1.xpose.msra.mxu0 0.0
    %143 = vmatprep.subr.mxu0 0.0
    %144 = vmatpush1.xpose.msra.mxu0 0.0
    %145 = vmatprep.subr.mxu0 0.0
    %146 = vmatpush1.xpose.msra.mxu0 0.0
    %147 = vmatprep.subr.mxu0 0.0
    %148 = vmatpush1.xpose.msra.mxu0 0.0
    %149 = vmatprep.subr.mxu0 0.0
    %150 = vmatpush1.xpose.msra.mxu0 0.0
    %151 = vmatprep.subr.mxu0 0.0
    %152 = vmatpush1.xpose.msra.mxu0 0.0
    %153 = vmatprep.subr.mxu0 0.0
    %154 = vmatpush1.xpose.msra.mxu0 0.0
    %155 = vmatprep.subr.mxu0 0.0
    %156 = vmatpush1.xpose.msra.mxu0 0.0
    %157 = vmatprep.mubr.f32.mxu0 0.0
    %158 = vmatmul.mubr.f32.gmra.mrb[0].mxu0 %v91
    %v159 = vpop.f32.mrb[0].mxu0
    %v160 = vadd.f32 0.0, %v159
    %v161 = vpop.f32.mrb[0].mxu0
    %162 = vdwg.mxu0
    %v163 = vmul.f32 %v89, %v89
    %v164 = vsel %vm76, %v163, 0.0
    %165 = vadd.xlane.f32.xlu0 %v164
    %v166 = vpop.xlane.xlu0 %165
    %167 = vxpose.xlu0.b32.start [1/16] %v166, 128
    %168 = vxpose.xlu0.b32.cont [2/16] 0.0, 128
    %169 = vxpose.xlu0.b32.cont [3/16] 0.0, 128
    %170 = vxpose.xlu0.b32.cont [4/16] 0.0, 128
    %171 = vxpose.xlu0.b32.cont [5/16] 0.0, 128
    %172 = vxpose.xlu0.b32.cont [6/16] 0.0, 128
    %173 = vxpose.xlu0.b32.cont [7/16] 0.0, 128
    %174 = vxpose.xlu0.b32.cont [8/16] 0.0, 128
    %175 = vxpose.xlu0.b32.cont [9/16] 0.0, 128
    %176 = vxpose.xlu0.b32.cont [10/16] 0.0, 128
    %177 = vxpose.xlu0.b32.cont [11/16] 0.0, 128
    %178 = vxpose.xlu0.b32.cont [12/16] 0.0, 128
    %179 = vxpose.xlu0.b32.cont [13/16] 0.0, 128
    %180 = vxpose.xlu0.b32.cont [14/16] 0.0, 128
    %181 = vxpose.xlu0.b32.cont [15/16] 0.0, 128
    %182 = vxpose.xlu0.b32.end [16/16] 0.0, 128
    %v183 = vpop.trf.xlu0
    %v184 = vpop.trf.xlu0
    %v185 = vpop.trf.xlu0
    %v186 = vpop.trf.xlu0
    %v187 = vpop.trf.xlu0
    %v188 = vpop.trf.xlu0
    %v189 = vpop.trf.xlu0
    %v190 = vpop.trf.xlu0
    %v191 = vpop.trf.xlu0
    %v192 = vpop.trf.xlu0
    %v193 = vpop.trf.xlu0
    %v194 = vpop.trf.xlu0
    %v195 = vpop.trf.xlu0
    %v196 = vpop.trf.xlu0
    %v197 = vpop.trf.xlu0
    %v198 = vpop.trf.xlu0
    %v199 = vlaneseq
    %v200 = vshrl.u32 %v199, 7
    %v201 = vsub.s32 0, %v200
    %v202 = vrot.slane %v183, %v201
    %v203 = vadd.f32 %v166, %v202
    %v204 = vmul.f32 %v160, 2.0
    %v205 = vsub.f32 %v203, %v204
    %v206 = vmax.f32 %v205, 0.0
    %v207 = vadd.f32 %v206, 1e-12
    %v208 = vrsqrt.pop %v207
    %v209 = vmul.f32 %v207, %v208
    %vm210 = vcmp.eq.f32.partialorder %v207, inf
    %v211 = vsel %vm210, %v207, %v209
    %vm212 = vcmp.eq.f32.partialorder %v207, 0.0
    %v213 = vand.u32 %v207, 2147483648
    %v214 = vsel %vm212, %v213, %v211
    %vm215 = vcmask 64512
    %v216 = vsel %vm215, %v214, 0.0
    %v217 = vrot.slane %v216, 4
    %v218 = vadd.f32 %v216, %v217
    %v219 = vrot.slane %v218, 2
    %v220 = vadd.f32 %v218, %v219
    %v221 = vrot.slane %v220, 1
    %v222 = vadd.f32 %v220, %v221
    %v223 = vrcp.pop 8.0
    %v224 = vmul.f32 %v222, %v223
    %v225 = vsub.f32 %v214, %v224
    %226 = vadd.xlane.f32.xlu0 %v216
    %v227 = vpop.xlane.xlu0 %226
    %v228 = vmul.f32 %v227, %v223
    %v229 = vsub.f32 %v225, %v228
    %v230 = vrot.slane %v227, 4
    %v231 = vadd.f32 %v227, %v230
    %v232 = vrot.slane %v231, 2
    %v233 = vadd.f32 %v231, %v232
    %v234 = vrot.slane %v233, 1
    %v235 = vadd.f32 %v233, %v234
    %s236 = vtos %v235
    %v237 = vrcp.pop 64.0
    %s238 = vtos %v237
    %s239 = smul.f32 %s236, %s238
    %v240 = vstv %s239
    %v241 = vadd.f32 %v229, %v240
    %v242 = vmul.f32 %v241, %v241
    %v243 = vsel %vm215, %v242, 0.0
    %244 = vadd.xlane.f32.xlu0 %v243
    %v245 = vpop.xlane.xlu0 %244
    %v246 = vrot.slane %v245, 4
    %v247 = vadd.f32 %v245, %v246
    %v248 = vrot.slane %v247, 2
    %v249 = vadd.f32 %v247, %v248
    %v250 = vrot.slane %v249, 1
    %v251 = vadd.f32 %v249, %v250
    %s252 = vtos %v251
    %v253 = vrcp.pop 64.0
    %s254 = vtos %v253
    %s255 = smul.f32 %s252, %s254
    %v256 = vld [vmem:[%s3] sm:$0xff]
    %v257 = vmul.f32 %v256, %v256
    %v258 = vsel %vm76, %v257, 0.0
    %259 = vadd.xlane.f32.xlu0 %v258
    %v260 = vpop.xlane.xlu0 %259
    %v261 = vrsqrt.pop %v260
    %v262 = vmul.f32 %v260, %v261
    %vm263 = vcmp.eq.f32.partialorder %v260, inf
    %v264 = vsel %vm263, %v260, %v262
    %vm265 = vcmp.eq.f32.partialorder %v260, 0.0
    %v266 = vand.u32 %v260, 2147483648
    %v267 = vsel %vm265, %v266, %v264
    %v268 = vmax.f32 %v267, 1e-12
    %v269 = vrcp.pop %v268
    %v270 = vmul.f32 %v256, %v269
    %v272 = vsel %vm76, %v270, 0
    %274 = vmatprep.subr.mxu0 0.0
    %275 = vmatpush1.xpose.msra.mxu0 %v272
    %276 = vmatprep.subr.mxu0 0.0
    %277 = vmatpush1.xpose.msra.mxu0 0.0
    %278 = vmatprep.subr.mxu0 0.0
    %279 = vmatpush1.xpose.msra.mxu0 0.0
    %280 = vmatprep.subr.mxu0 0.0
    %281 = vmatpush1.xpose.msra.mxu0 0.0
    %282 = vmatprep.subr.mxu0 0.0
    %283 = vmatpush1.xpose.msra.mxu0 0.0
    %284 = vmatprep.subr.mxu0 0.0
    %285 = vmatpush1.xpose.msra.mxu0 0.0
    %286 = vmatprep.subr.mxu0 0.0
    %287 = vmatpush1.xpose.msra.mxu0 0.0
    %288 = vmatprep.subr.mxu0 0.0
    %289 = vmatpush1.xpose.msra.mxu0 0.0
    %290 = vmatprep.subr.mxu0 0.0
    %291 = vmatpush1.xpose.msra.mxu0 0.0
    %292 = vmatprep.subr.mxu0 0.0
    %293 = vmatpush1.xpose.msra.mxu0 0.0
    %294 = vmatprep.subr.mxu0 0.0
    %295 = vmatpush1.xpose.msra.mxu0 0.0
    %296 = vmatprep.subr.mxu0 0.0
    %297 = vmatpush1.xpose.msra.mxu0 0.0
    %298 = vmatprep.subr.mxu0 0.0
    %299 = vmatpush1.xpose.msra.mxu0 0.0
    %300 = vmatprep.subr.mxu0 0.0
    %301 = vmatpush1.xpose.msra.mxu0 0.0
    %302 = vmatprep.subr.mxu0 0.0
    %303 = vmatpush1.xpose.msra.mxu0 0.0
    %304 = vmatprep.subr.mxu0 0.0
    %305 = vmatpush1.xpose.msra.mxu0 0.0
    %306 = vmatprep.subr.mxu0 0.0
    %307 = vmatpush1.xpose.msra.mxu0 0.0
    %308 = vmatprep.subr.mxu0 0.0
    %309 = vmatpush1.xpose.msra.mxu0 0.0
    %310 = vmatprep.subr.mxu0 0.0
    %311 = vmatpush1.xpose.msra.mxu0 0.0
    %312 = vmatprep.subr.mxu0 0.0
    %313 = vmatpush1.xpose.msra.mxu0 0.0
    %314 = vmatprep.subr.mxu0 0.0
    %315 = vmatpush1.xpose.msra.mxu0 0.0
    %316 = vmatprep.subr.mxu0 0.0
    %317 = vmatpush1.xpose.msra.mxu0 0.0
    %318 = vmatprep.subr.mxu0 0.0
    %319 = vmatpush1.xpose.msra.mxu0 0.0
    %320 = vmatprep.subr.mxu0 0.0
    %321 = vmatpush1.xpose.msra.mxu0 0.0
    %322 = vmatprep.subr.mxu0 0.0
    %323 = vmatpush1.xpose.msra.mxu0 0.0
    %324 = vmatprep.subr.mxu0 0.0
    %325 = vmatpush1.xpose.msra.mxu0 0.0
    %326 = vmatprep.subr.mxu0 0.0
    %327 = vmatpush1.xpose.msra.mxu0 0.0
    %328 = vmatprep.subr.mxu0 0.0
    %329 = vmatpush1.xpose.msra.mxu0 0.0
    %330 = vmatprep.subr.mxu0 0.0
    %331 = vmatpush1.xpose.msra.mxu0 0.0
    %332 = vmatprep.subr.mxu0 0.0
    %333 = vmatpush1.xpose.msra.mxu0 0.0
    %334 = vmatprep.subr.mxu0 0.0
    %335 = vmatpush1.xpose.msra.mxu0 0.0
    %336 = vmatprep.subr.mxu0 0.0
    %337 = vmatpush1.xpose.msra.mxu0 0.0
    %338 = vmatprep.mubr.f32.mxu0 0.0
    %339 = vmatmul.mubr.f32.gmra.mrb[0].mxu0 %v272
    %v340 = vpop.f32.mrb[0].mxu0
    %v341 = vadd.f32 0.0, %v340
    %v342 = vpop.f32.mrb[0].mxu0
    %343 = vdwg.mxu0
    %v344 = vmul.f32 %v270, %v270
    %v345 = vsel %vm76, %v344, 0.0
    %346 = vadd.xlane.f32.xlu0 %v345
    %v347 = vpop.xlane.xlu0 %346
    %348 = vxpose.xlu0.b32.start [1/16] %v347, 128
    %349 = vxpose.xlu0.b32.cont [2/16] 0.0, 128
    %350 = vxpose.xlu0.b32.cont [3/16] 0.0, 128
    %351 = vxpose.xlu0.b32.cont [4/16] 0.0, 128
    %352 = vxpose.xlu0.b32.cont [5/16] 0.0, 128
    %353 = vxpose.xlu0.b32.cont [6/16] 0.0, 128
    %354 = vxpose.xlu0.b32.cont [7/16] 0.0, 128
    %355 = vxpose.xlu0.b32.cont [8/16] 0.0, 128
    %356 = vxpose.xlu0.b32.cont [9/16] 0.0, 128
    %357 = vxpose.xlu0.b32.cont [10/16] 0.0, 128
    %358 = vxpose.xlu0.b32.cont [11/16] 0.0, 128
    %359 = vxpose.xlu0.b32.cont [12/16] 0.0, 128
    %360 = vxpose.xlu0.b32.cont [13/16] 0.0, 128
    %361 = vxpose.xlu0.b32.cont [14/16] 0.0, 128
    %362 = vxpose.xlu0.b32.cont [15/16] 0.0, 128
    %363 = vxpose.xlu0.b32.end [16/16] 0.0, 128
    %v364 = vpop.trf.xlu0
    %v365 = vpop.trf.xlu0
    %v366 = vpop.trf.xlu0
    %v367 = vpop.trf.xlu0
    %v368 = vpop.trf.xlu0
    %v369 = vpop.trf.xlu0
    %v370 = vpop.trf.xlu0
    %v371 = vpop.trf.xlu0
    %v372 = vpop.trf.xlu0
    %v373 = vpop.trf.xlu0
    %v374 = vpop.trf.xlu0
    %v375 = vpop.trf.xlu0
    %v376 = vpop.trf.xlu0
    %v377 = vpop.trf.xlu0
    %v378 = vpop.trf.xlu0
    %v379 = vpop.trf.xlu0
    %v380 = vlaneseq
    %v381 = vshrl.u32 %v380, 7
    %v382 = vsub.s32 0, %v381
    %v383 = vrot.slane %v364, %v382
    %v384 = vadd.f32 %v347, %v383
    %v385 = vmul.f32 %v341, 2.0
    %v386 = vsub.f32 %v384, %v385
    %v387 = vmax.f32 %v386, 0.0
    %v388 = vadd.f32 %v387, 1e-12
    %v389 = vrsqrt.pop %v388
    %v390 = vmul.f32 %v388, %v389
    %vm391 = vcmp.eq.f32.partialorder %v388, inf
    %v392 = vsel %vm391, %v388, %v390
    %vm393 = vcmp.eq.f32.partialorder %v388, 0.0
    %v394 = vand.u32 %v388, 2147483648
    %v395 = vsel %vm393, %v394, %v392
    %v396 = vsel %vm215, %v395, 0.0
    %v397 = vrot.slane %v396, 4
    %v398 = vadd.f32 %v396, %v397
    %v399 = vrot.slane %v398, 2
    %v400 = vadd.f32 %v398, %v399
    %v401 = vrot.slane %v400, 1
    %v402 = vadd.f32 %v400, %v401
    %v403 = vmul.f32 %v402, %v223
    %v404 = vsub.f32 %v395, %v403
    %405 = vadd.xlane.f32.xlu0 %v396
    %v406 = vpop.xlane.xlu0 %405
    %v407 = vmul.f32 %v406, %v223
    %v408 = vsub.f32 %v404, %v407
    %v409 = vrot.slane %v406, 4
    %v410 = vadd.f32 %v406, %v409
    %v411 = vrot.slane %v410, 2
    %v412 = vadd.f32 %v410, %v411
    %v413 = vrot.slane %v412, 1
    %v414 = vadd.f32 %v412, %v413
    %s415 = vtos %v414
    %v416 = vrcp.pop 64.0
    %s417 = vtos %v416
    %s418 = smul.f32 %s415, %s417
    %v419 = vstv %s418
    %v420 = vadd.f32 %v408, %v419
    %v421 = vmul.f32 %v241, %v420
    %v422 = vsel %vm215, %v421, 0.0
    %423 = vadd.xlane.f32.xlu0 %v422
    %v424 = vpop.xlane.xlu0 %423
    %v425 = vrot.slane %v424, 4
    %v426 = vadd.f32 %v424, %v425
    %v427 = vrot.slane %v426, 2
    %v428 = vadd.f32 %v426, %v427
    %v429 = vrot.slane %v428, 1
    %v430 = vadd.f32 %v428, %v429
    %s431 = vtos %v430
    %v432 = vrcp.pop 64.0
    %s433 = vtos %v432
    %s434 = smul.f32 %s431, %s433
    %v435 = vmul.f32 %v420, %v420
    %v436 = vsel %vm215, %v435, 0.0
    %437 = vadd.xlane.f32.xlu0 %v436
    %v438 = vpop.xlane.xlu0 %437
    %v439 = vrot.slane %v438, 4
    %v440 = vadd.f32 %v438, %v439
    %v441 = vrot.slane %v440, 2
    %v442 = vadd.f32 %v440, %v441
    %v443 = vrot.slane %v442, 1
    %v444 = vadd.f32 %v442, %v443
    %s445 = vtos %v444
    %v446 = vrcp.pop 64.0
    %s447 = vtos %v446
    %s448 = smul.f32 %s445, %s447
    %s449 = smul.f32 %s255, %s448
    %s450 = sadd.f32 %s449, 1e-09
    %v451 = vstv %s450
    %v452 = vrsqrt.pop %v451
    %v453 = vmul.f32 %v451, %v452
    %vm454 = vcmp.eq.f32.partialorder %v451, inf
    %v455 = vsel %vm454, %v451, %v453
    %vm456 = vcmp.eq.f32.partialorder %v451, 0.0
    %v457 = vand.u32 %v451, 2147483648
    %v458 = vsel %vm456, %v457, %v455
    %s459 = vtos %v458
    %v460 = vstv %s459
    %v461 = vrcp.pop %v460
    %s462 = vtos %v461
    %s463 = smul.f32 %s434, %s462
    %v464 = vld [vmem:[#allocation2] sm:$0xff]
    %v465 = vmul.f32 %v464, %v464
    %vm466 = vcmask 523264
    %v467 = vsel %vm466, %v465, 0.0
    %468 = vadd.xlane.f32.xlu0 %v467
    %v469 = vpop.xlane.xlu0 %468
    %v470 = vrsqrt.pop %v469
    %v471 = vmul.f32 %v469, %v470
    %vm472 = vcmp.eq.f32.partialorder %v469, inf
    %v473 = vsel %vm472, %v469, %v471
    %vm474 = vcmp.eq.f32.partialorder %v469, 0.0
    %v475 = vand.u32 %v469, 2147483648
    %v476 = vsel %vm474, %v475, %v473
    %v477 = vmax.f32 %v476, 1e-12
    %v478 = vrcp.pop %v477
    %v479 = vmul.f32 %v464, %v478
    %v481 = vsel %vm466, %v479, 0
    %483 = vmatprep.subr.mxu0 0.0
    %484 = vmatpush1.xpose.msra.mxu0 %v481
    %485 = vmatprep.subr.mxu0 0.0
    %486 = vmatpush1.xpose.msra.mxu0 0.0
    %487 = vmatprep.subr.mxu0 0.0
    %488 = vmatpush1.xpose.msra.mxu0 0.0
    %489 = vmatprep.subr.mxu0 0.0
    %490 = vmatpush1.xpose.msra.mxu0 0.0
    %491 = vmatprep.subr.mxu0 0.0
    %492 = vmatpush1.xpose.msra.mxu0 0.0
    %493 = vmatprep.subr.mxu0 0.0
    %494 = vmatpush1.xpose.msra.mxu0 0.0
    %495 = vmatprep.subr.mxu0 0.0
    %496 = vmatpush1.xpose.msra.mxu0 0.0
    %497 = vmatprep.subr.mxu0 0.0
    %498 = vmatpush1.xpose.msra.mxu0 0.0
    %499 = vmatprep.subr.mxu0 0.0
    %500 = vmatpush1.xpose.msra.mxu0 0.0
    %501 = vmatprep.subr.mxu0 0.0
    %502 = vmatpush1.xpose.msra.mxu0 0.0
    %503 = vmatprep.subr.mxu0 0.0
    %504 = vmatpush1.xpose.msra.mxu0 0.0
    %505 = vmatprep.subr.mxu0 0.0
    %506 = vmatpush1.xpose.msra.mxu0 0.0
    %507 = vmatprep.subr.mxu0 0.0
    %508 = vmatpush1.xpose.msra.mxu0 0.0
    %509 = vmatprep.subr.mxu0 0.0
    %510 = vmatpush1.xpose.msra.mxu0 0.0
    %511 = vmatprep.subr.mxu0 0.0
    %512 = vmatpush1.xpose.msra.mxu0 0.0
    %513 = vmatprep.subr.mxu0 0.0
    %514 = vmatpush1.xpose.msra.mxu0 0.0
    %515 = vmatprep.subr.mxu0 0.0
    %516 = vmatpush1.xpose.msra.mxu0 0.0
    %517 = vmatprep.subr.mxu0 0.0
    %518 = vmatpush1.xpose.msra.mxu0 0.0
    %519 = vmatprep.subr.mxu0 0.0
    %520 = vmatpush1.xpose.msra.mxu0 0.0
    %521 = vmatprep.subr.mxu0 0.0
    %522 = vmatpush1.xpose.msra.mxu0 0.0
    %523 = vmatprep.subr.mxu0 0.0
    %524 = vmatpush1.xpose.msra.mxu0 0.0
    %525 = vmatprep.subr.mxu0 0.0
    %526 = vmatpush1.xpose.msra.mxu0 0.0
    %527 = vmatprep.subr.mxu0 0.0
    %528 = vmatpush1.xpose.msra.mxu0 0.0
    %529 = vmatprep.subr.mxu0 0.0
    %530 = vmatpush1.xpose.msra.mxu0 0.0
    %531 = vmatprep.subr.mxu0 0.0
    %532 = vmatpush1.xpose.msra.mxu0 0.0
    %533 = vmatprep.subr.mxu0 0.0
    %534 = vmatpush1.xpose.msra.mxu0 0.0
    %535 = vmatprep.subr.mxu0 0.0
    %536 = vmatpush1.xpose.msra.mxu0 0.0
    %537 = vmatprep.subr.mxu0 0.0
    %538 = vmatpush1.xpose.msra.mxu0 0.0
    %539 = vmatprep.subr.mxu0 0.0
    %540 = vmatpush1.xpose.msra.mxu0 0.0
    %541 = vmatprep.subr.mxu0 0.0
    %542 = vmatpush1.xpose.msra.mxu0 0.0
    %543 = vmatprep.subr.mxu0 0.0
    %544 = vmatpush1.xpose.msra.mxu0 0.0
    %545 = vmatprep.subr.mxu0 0.0
    %546 = vmatpush1.xpose.msra.mxu0 0.0
    %547 = vmatprep.mubr.f32.mxu0 0.0
    %548 = vmatmul.mubr.f32.gmra.mrb[0].mxu0 %v481
    %v549 = vpop.f32.mrb[0].mxu0
    %v550 = vadd.f32 0.0, %v549
    %v551 = vpop.f32.mrb[0].mxu0
    %552 = vdwg.mxu0
    %v553 = vmul.f32 %v479, %v479
    %v554 = vsel %vm466, %v553, 0.0
    %555 = vadd.xlane.f32.xlu0 %v554
    %v556 = vpop.xlane.xlu0 %555
    %557 = vxpose.xlu0.b32.start [1/16] %v556, 128
    %558 = vxpose.xlu0.b32.cont [2/16] 0.0, 128
    %559 = vxpose.xlu0.b32.cont [3/16] 0.0, 128
    %560 = vxpose.xlu0.b32.cont [4/16] 0.0, 128
    %561 = vxpose.xlu0.b32.cont [5/16] 0.0, 128
    %562 = vxpose.xlu0.b32.cont [6/16] 0.0, 128
    %563 = vxpose.xlu0.b32.cont [7/16] 0.0, 128
    %564 = vxpose.xlu0.b32.cont [8/16] 0.0, 128
    %565 = vxpose.xlu0.b32.cont [9/16] 0.0, 128
    %566 = vxpose.xlu0.b32.cont [10/16] 0.0, 128
    %567 = vxpose.xlu0.b32.cont [11/16] 0.0, 128
    %568 = vxpose.xlu0.b32.cont [12/16] 0.0, 128
    %569 = vxpose.xlu0.b32.cont [13/16] 0.0, 128
    %570 = vxpose.xlu0.b32.cont [14/16] 0.0, 128
    %571 = vxpose.xlu0.b32.cont [15/16] 0.0, 128
    %572 = vxpose.xlu0.b32.end [16/16] 0.0, 128
    %v573 = vpop.trf.xlu0
    %v574 = vpop.trf.xlu0
    %v575 = vpop.trf.xlu0
    %v576 = vpop.trf.xlu0
    %v577 = vpop.trf.xlu0
    %v578 = vpop.trf.xlu0
    %v579 = vpop.trf.xlu0
    %v580 = vpop.trf.xlu0
    %v581 = vpop.trf.xlu0
    %v582 = vpop.trf.xlu0
    %v583 = vpop.trf.xlu0
    %v584 = vpop.trf.xlu0
    %v585 = vpop.trf.xlu0
    %v586 = vpop.trf.xlu0
    %v587 = vpop.trf.xlu0
    %v588 = vpop.trf.xlu0
    %v589 = vlaneseq
    %v590 = vshrl.u32 %v589, 7
    %v591 = vsub.s32 0, %v590
    %v592 = vrot.slane %v573, %v591
    %v593 = vadd.f32 %v556, %v592
    %v594 = vmul.f32 %v550, 2.0
    %v595 = vsub.f32 %v593, %v594
    %v596 = vmax.f32 %v595, 0.0
    %v597 = vadd.f32 %v596, 1e-12
    %v598 = vrsqrt.pop %v597
    %v599 = vmul.f32 %v597, %v598
    %vm600 = vcmp.eq.f32.partialorder %v597, inf
    %v601 = vsel %vm600, %v597, %v599
    %vm602 = vcmp.eq.f32.partialorder %v597, 0.0
    %v603 = vand.u32 %v597, 2147483648
    %v604 = vsel %vm602, %v603, %v601
    %v605 = vsel %vm215, %v604, 0.0
    %v606 = vrot.slane %v605, 4
    %v607 = vadd.f32 %v605, %v606
    %v608 = vrot.slane %v607, 2
    %v609 = vadd.f32 %v607, %v608
    %v610 = vrot.slane %v609, 1
    %v611 = vadd.f32 %v609, %v610
    %v612 = vmul.f32 %v611, %v223
    %v613 = vsub.f32 %v604, %v612
    %614 = vadd.xlane.f32.xlu0 %v605
    %v615 = vpop.xlane.xlu0 %614
    %v616 = vmul.f32 %v615, %v223
    %v617 = vsub.f32 %v613, %v616
    %v618 = vrot.slane %v615, 4
    %v619 = vadd.f32 %v615, %v618
    %v620 = vrot.slane %v619, 2
    %v621 = vadd.f32 %v619, %v620
    %v622 = vrot.slane %v621, 1
    %v623 = vadd.f32 %v621, %v622
    %s624 = vtos %v623
    %v625 = vrcp.pop 64.0
    %s626 = vtos %v625
    %s627 = smul.f32 %s624, %s626
    %v628 = vstv %s627
    %v629 = vadd.f32 %v617, %v628
    %v630 = vmul.f32 %v241, %v629
    %v631 = vsel %vm215, %v630, 0.0
    %632 = vadd.xlane.f32.xlu0 %v631
    %v633 = vpop.xlane.xlu0 %632
    %v634 = vrot.slane %v633, 4
    %v635 = vadd.f32 %v633, %v634
    %v636 = vrot.slane %v635, 2
    %v637 = vadd.f32 %v635, %v636
    %v638 = vrot.slane %v637, 1
    %v639 = vadd.f32 %v637, %v638
    %s640 = vtos %v639
    %v641 = vrcp.pop 64.0
    %s642 = vtos %v641
    %s643 = smul.f32 %s640, %s642
    %v644 = vmul.f32 %v629, %v629
    %v645 = vsel %vm215, %v644, 0.0
    %646 = vadd.xlane.f32.xlu0 %v645
    %v647 = vpop.xlane.xlu0 %646
    %v648 = vrot.slane %v647, 4
    %v649 = vadd.f32 %v647, %v648
    %v650 = vrot.slane %v649, 2
    %v651 = vadd.f32 %v649, %v650
    %v652 = vrot.slane %v651, 1
    %v653 = vadd.f32 %v651, %v652
    %s654 = vtos %v653
    %v655 = vrcp.pop 64.0
    %s656 = vtos %v655
    %s657 = smul.f32 %s654, %s656
    %s658 = smul.f32 %s255, %s657
    %s659 = sadd.f32 %s658, 1e-09
    %v660 = vstv %s659
    %v661 = vrsqrt.pop %v660
    %v662 = vmul.f32 %v660, %v661
    %vm663 = vcmp.eq.f32.partialorder %v660, inf
    %v664 = vsel %vm663, %v660, %v662
    %vm665 = vcmp.eq.f32.partialorder %v660, 0.0
    %v666 = vand.u32 %v660, 2147483648
    %v667 = vsel %vm665, %v666, %v664
    %s668 = vtos %v667
    %v669 = vstv %s668
    %v670 = vrcp.pop %v669
    %s671 = vtos %v670
    %s672 = smul.f32 %s643, %s671
    %s673 = sadd.f32 %s463, 0.0
    %s674 = sadd.f32 %s673, %s672
    %v675 = vrcp.pop 2.0
    %s676 = vtos %v675
    %s677 = smul.f32 %s674, %s676
    %s678 = smul.f32 %s677, 0.1
    %s679 = sadd.f32 %s73, %s678
    %vm680 = vcmp.eq.s32.totalorder %v48, 0
    %v681 = vstv %s679
    %v682 = vsel %vm680, %v681, 0.0
    %vm683 = vcmp.eq.s32.totalorder %v48, 1
    %v684 = vstv %s73
    %v685 = vsel %vm683, %v684, %v682
    %vm686 = vcmp.eq.s32.totalorder %v48, 2
    %v687 = vstv %s677
    %v688 = vsel %vm686, %v687, %v685
    %vm689 = vcmp.eq.s32.totalorder %v48, 3
    %v690 = vstv %s463
    %v691 = vsel %vm689, %v690, %v688
    %vm692 = vcmp.eq.s32.totalorder %v48, 4
    %v693 = vstv %s672
    %v694 = vsel %vm692, %v693, %v691
    %695 = vst [vmem:[%s5] sm:$0x1] %v694
    // Predicated region
    $region26: #{loss_dc_forward.1} parent=1 // pred_check
      _
    $region27: #{loss_dc_forward.1} parent=1 // pred_check_branch
      %697 = sbr.rel (0) target = $region29
    $region28: #{loss_dc_forward.1} parent=1 // pred_region
      _
    $region29: #{loss_dc_forward.1} parent=1 // pred_fallthru
      _
    // Predicated region
    $region30: #{loss_dc_forward.1} parent=1 // pred_check
      _
    $region31: #{loss_dc_forward.1} parent=1 // pred_check_branch
      %699 = sbr.rel (0) target = $region33
    $region32: #{loss_dc_forward.1} parent=1 // pred_region
      _
    $region33: #{loss_dc_forward.1} parent=1 // pred_fallthru
      _
    %700 = vsyncpa [#allocation3], 1

</llo_original>
